<compile_context>
chip_gen: v7x
topology: tpu7x:2x2x1
jax: 0.10.0
libtpu: 0.0.40
codegen_flags: <defaults>
</compile_context>

<pallas_src>
import math
import numpy as np

import jax
import jax.numpy as jnp
from jax.experimental import pallas as pl
from jax.experimental.pallas import tpu as pltpu

STATE_SIZE = 4        # CartPole-v1 observation dim
ACTION_SIZE = 2       # CartPole-v1 action dim
LAYER1 = 128
LAYER2 = 128
DROP_P = 0.4
# keep an element iff hash(uint32) >= threshold  ->  P(keep) = 1 - p
# (int() truncates, so P(keep) = 0.6 + ~1e-10 -- not bit-exact 0.4, negligible)
DROP_THRESHOLD = int(DROP_P * (1 << 32))
OUT_SUB = 8           # fc3 output padded to 8 sublanes (sliced to ACTION_SIZE outside)
MAX_TB = 1024         # max batch-tile rows per grid step


def _round_up(n, m):
    return ((n + m - 1) // m) * m


def _pick_tiling(B):
    """Choose (tile_rows, padded_batch).

    * Small batches (<= 256 rows): one tile covering the whole (8-padded) batch.
    * Larger batches: tiles are a multiple of 128 (the transposed output's lane
      axis is batch, so tiled blocks must be 128-aligned), capped at MAX_TB, and
      sized to at most half the batch so >= 2 parallel tiles exist (feeds both
      TensorCores on v7x; harmless single-core loop on v5e/v6e).
    """
    b8 = _round_up(B, 8)
    if b8 <= 256:
        return b8, b8
    half = _round_up((b8 + 1) // 2, 128)
    tb = min(MAX_TB, half)
    b_pad = _round_up(b8, tb)
    return tb, b_pad


def mlp_kernel(seed_ref, x_ref, w1_ref, b1_ref, w2_ref, b2_ref, w3t_ref, b3t_ref, o_ref):
    tb = x_ref.shape[0]

    # ---- fc1 + relu on the VPU (K = STATE_SIZE = 4: four broadcast FMAs) ----
    x = x_ref[...]                                   # (tb, 4)  f32
    w1 = w1_ref[...]                                 # (4, 128) f32
    h1 = b1_ref[...] + x[:, 0:1] * w1[0:1, :]        # (tb, 128) f32
    for k in range(1, STATE_SIZE):
        h1 = h1 + x[:, k:k + 1] * w1[k:k + 1, :]
    h1 = jnp.maximum(h1, 0.0)

    # ---- fc2 + relu (bf16 weights, f32 accumulation on the MXU) ----
    h2 = jnp.dot(h1.astype(jnp.bfloat16), w2_ref[...],
                 preferred_element_type=jnp.float32) + b2_ref[...]
    h2 = jnp.maximum(h2, 0.0)                        # (tb, 128) f32

    # ---- dropout(p=0.4): in-kernel counter-based hash -> keep mask ----------
    # Per-element uint32 id mixed with the per-call seed through a lowbias32-
    # style integer hash; keep iff bits >= threshold.  The 1/(1-p) inverted-
    # dropout scale is folded into the fc3 weights at parameter-prep time.
    tile_u = pl.program_id(0).astype(jnp.uint32)
    row = jax.lax.broadcasted_iota(jnp.int32, (tb, LAYER2), 0).astype(jnp.uint32)
    col = jax.lax.broadcasted_iota(jnp.int32, (tb, LAYER2), 1).astype(jnp.uint32)
    seed_u = seed_ref[0].astype(jnp.uint32)
    gid = tile_u * np.uint32(tb * LAYER2) + row * np.uint32(LAYER2) + col
    h = gid ^ (seed_u * np.uint32(0x9E3779B9))
    h = (h ^ (h >> 16)) * np.uint32(0x7FEB352D)
    h = (h ^ (h >> 15)) * np.uint32(0x846CA68B)
    h = h ^ (h >> 16)
    keep = h >= np.uint32(DROP_THRESHOLD)
    h2 = jnp.where(keep, h2, 0.0)

    # ---- fc3, computed directly in the transposed output layout -------------
    # w3t: (OUT_SUB, LAYER2) bf16 (rows >= ACTION_SIZE are zero).  Contract the
    # LAYER2 axis of both operands -> (OUT_SUB, tb): lane axis is batch, only
    # 8 sublanes of writeback instead of 128 padded lanes per row.
    out_t = jax.lax.dot_general(
        w3t_ref[...], h2.astype(jnp.bfloat16),
        dimension_numbers=(((1,), (1,)), ((), ())),
        preferred_element_type=jnp.float32)          # (OUT_SUB, tb)
    o_ref[...] = (out_t + b3t_ref[...]).astype(o_ref.dtype)


def neural_net_forward(x, params, dropout_key):
    """x: (B, STATE_SIZE) float32. params: prepared dict (see init_params).
    dropout_key: jax PRNG key (vary per call for fresh dropout masks)."""
    B = x.shape[0]
    tb, b_pad = _pick_tiling(B)
    if b_pad != B:
        x = jnp.pad(x, ((0, b_pad - B), (0, 0)))

    # Single int32 seed delivered via scalar prefetch (SMEM); the kernel's
    # integer hash expands it into a per-element dropout mask.
    seed = jax.random.randint(dropout_key, (1,), 0,
                              jnp.iinfo(jnp.int32).max, dtype=jnp.int32)

    flops = 2 * b_pad * (STATE_SIZE * LAYER1 + LAYER1 * LAYER2 + LAYER2 * OUT_SUB)
    bytes_accessed = (b_pad * STATE_SIZE * 4            # x
                      + OUT_SUB * b_pad * 4             # transposed logits out
                      + STATE_SIZE * LAYER1 * 4 + LAYER1 * 4      # w1, b1 (f32)
                      + LAYER1 * LAYER2 * 2 + LAYER2 * 4          # w2 (bf16), b2
                      + OUT_SUB * LAYER2 * 2 + OUT_SUB * 4)       # w3t (bf16), b3t

    out_t = pl.pallas_call(
        mlp_kernel,
        out_shape=jax.ShapeDtypeStruct((OUT_SUB, b_pad), jnp.float32),
        grid_spec=pltpu.PrefetchScalarGridSpec(
            num_scalar_prefetch=1,
            grid=(b_pad // tb,),
            in_specs=[
                pl.BlockSpec((tb, STATE_SIZE), lambda i, seed: (i, 0)),   # x (batch-tiled)
                pl.BlockSpec((STATE_SIZE, LAYER1), lambda i, seed: (0, 0)),  # w1 (resident)
                pl.BlockSpec((1, LAYER1), lambda i, seed: (0, 0)),           # b1
                pl.BlockSpec((LAYER1, LAYER2), lambda i, seed: (0, 0)),      # w2
                pl.BlockSpec((1, LAYER2), lambda i, seed: (0, 0)),           # b2
                pl.BlockSpec((OUT_SUB, LAYER2), lambda i, seed: (0, 0)),     # w3 (T, scaled, padded)
                pl.BlockSpec((OUT_SUB, 1), lambda i, seed: (0, 0)),          # b3 (T, padded)
            ],
            out_specs=pl.BlockSpec((OUT_SUB, tb), lambda i, seed: (0, i)),
        ),
        compiler_params=pltpu.CompilerParams(
            dimension_semantics=("parallel",)),
        cost_estimate=pl.CostEstimate(flops=flops, transcendentals=0,
                                      bytes_accessed=bytes_accessed),
    )(seed, x,
      params["w1"], params["b1"],
      params["w2"], params["b2"],
      params["w3t"], params["b3t"])

    # (OUT_SUB, b_pad) -> (B, ACTION_SIZE)
    return out_t[:ACTION_SIZE, :B].T


def init_params(key):
    """Init matching nn.Linear's U(-1/sqrt(fan_in), 1/sqrt(fan_in)), then prepare
    for the kernel: bf16 fc2/fc3 weights, 1/(1-p) inverted-dropout scale folded
    into fc3 (do NOT apply it again at runtime), fc3 stored transposed and
    zero-padded to OUT_SUB sublanes."""
    def linear(key, fan_in, fan_out):
        kw, kb = jax.random.split(key)
        bound = 1.0 / math.sqrt(fan_in)
        w = jax.random.uniform(kw, (fan_in, fan_out), jnp.float32, -bound, bound)
        b = jax.random.uniform(kb, (fan_out,), jnp.float32, -bound, bound)
        return w, b

    k1, k2, k3 = jax.random.split(key, 3)
    w1, b1 = linear(k1, STATE_SIZE, LAYER1)
    w2, b2 = linear(k2, LAYER1, LAYER2)
    w3, b3 = linear(k3, LAYER2, ACTION_SIZE)

    # Fold inverted-dropout scale into fc3 weights (fc3 is linear; bias untouched).
    w3 = w3 * (1.0 / (1.0 - DROP_P))
    # Transposed + sublane-padded fc3: (OUT_SUB, LAYER2) / (OUT_SUB, 1); extra rows zero.
    w3t = jnp.zeros((OUT_SUB, LAYER2), jnp.float32).at[:ACTION_SIZE, :].set(w3.T)
    b3t = jnp.zeros((OUT_SUB, 1), jnp.float32).at[:ACTION_SIZE, 0].set(b3)

    return {
        "w1": w1,                          # f32 (tiny; preserves input precision)
        "b1": b1.reshape(1, LAYER1),
        "w2": w2.astype(jnp.bfloat16),     # bf16: halves dominant weight-DMA bytes
        "b2": b2.reshape(1, LAYER2),
        "w3t": w3t.astype(jnp.bfloat16),
        "b3t": b3t,
    }


if __name__ == "__main__":
    key = jax.random.PRNGKey(0)
    kp, kx, kd = jax.random.split(key, 3)

    params = init_params(kp)
    x = jax.random.normal(kx, (8, STATE_SIZE), dtype=jnp.float32)  # batch of 8 states

    # NOTE: dropout is applied unconditionally, matching F.dropout's default
    # training=True in the reference forward. Vary kd per call for fresh masks.
    out = neural_net_forward(x, params, dropout_key=kd)
    jax.block_until_ready(out)

    assert out.shape == (8, ACTION_SIZE)
    assert out.dtype == jnp.float32
    print("KERNEL_OK")
</pallas_src>

<mosaic_0001>
module attributes {stable_mosaic.version = 11 : i64} {
  func.func @mlp_kernel(%arg0: i32, %arg1: memref<1xi32, #tpu.memory_space<smem>>, %arg2: memref<8x4xf32, #tpu.memory_space<vmem>>, %arg3: memref<4x128xf32, #tpu.memory_space<vmem>>, %arg4: memref<1x128xf32, #tpu.memory_space<vmem>>, %arg5: memref<128x128xbf16, #tpu.memory_space<vmem>>, %arg6: memref<1x128xf32, #tpu.memory_space<vmem>>, %arg7: memref<8x128xbf16, #tpu.memory_space<vmem>>, %arg8: memref<8x1xf32, #tpu.memory_space<vmem>>, %arg9: memref<8x8xf32, #tpu.memory_space<vmem>>) attributes {dimension_semantics = [#tpu.dimension_semantics<parallel>], iteration_bounds = array<i64: 1>, scalar_prefetch = 1 : i64, scratch_operands = 0 : i64, tpu.core_type = #tpu.core_type<tc>, window_params = [{transform_indices = @transform_0, window_bounds = array<i64: 8, 4>}, {pipeline_mode = #tpu.pipeline_mode<synchronous>, transform_indices = @transform_1, window_bounds = array<i64: 4, 128>}, {pipeline_mode = #tpu.pipeline_mode<synchronous>, transform_indices = @transform_2, window_bounds = array<i64: 1, 128>}, {pipeline_mode = #tpu.pipeline_mode<synchronous>, transform_indices = @transform_3, window_bounds = array<i64: 128, 128>}, {pipeline_mode = #tpu.pipeline_mode<synchronous>, transform_indices = @transform_4, window_bounds = array<i64: 1, 128>}, {pipeline_mode = #tpu.pipeline_mode<synchronous>, transform_indices = @transform_5, window_bounds = array<i64: 8, 128>}, {pipeline_mode = #tpu.pipeline_mode<synchronous>, transform_indices = @transform_6, window_bounds = array<i64: 8, 1>}, {transform_indices = @transform_7, window_bounds = array<i64: 8, 8>}]} {
    %c0 = arith.constant 0 : index
    %c0_0 = arith.constant 0 : index
    %0 = vector.load %arg2[%c0, %c0_0] : memref<8x4xf32, #tpu.memory_space<vmem>>, vector<8x4xf32>
    %c0_1 = arith.constant 0 : index
    %c0_2 = arith.constant 0 : index
    %1 = vector.load %arg3[%c0_1, %c0_2] : memref<4x128xf32, #tpu.memory_space<vmem>>, vector<4x128xf32>
    %c0_3 = arith.constant 0 : index
    %c0_4 = arith.constant 0 : index
    %2 = vector.load %arg4[%c0_3, %c0_4] : memref<1x128xf32, #tpu.memory_space<vmem>>, vector<1x128xf32>
    %3 = vector.extract_strided_slice %0 {offsets = [0, 0], sizes = [8, 1], strides = [1, 1]} : vector<8x4xf32> to vector<8x1xf32>
    %4 = vector.extract_strided_slice %1 {offsets = [0, 0], sizes = [1, 128], strides = [1, 1]} : vector<4x128xf32> to vector<1x128xf32>
    %5 = vector.broadcast %3 : vector<8x1xf32> to vector<8x128xf32>
    %6 = vector.broadcast %4 : vector<1x128xf32> to vector<8x128xf32>
    %7 = arith.mulf %5, %6 : vector<8x128xf32>
    %8 = vector.broadcast %2 : vector<1x128xf32> to vector<8x128xf32>
    %9 = arith.addf %8, %7 : vector<8x128xf32>
    %10 = vector.extract_strided_slice %0 {offsets = [0, 1], sizes = [8, 1], strides = [1, 1]} : vector<8x4xf32> to vector<8x1xf32>
    %11 = vector.extract_strided_slice %1 {offsets = [1, 0], sizes = [1, 128], strides = [1, 1]} : vector<4x128xf32> to vector<1x128xf32>
    %12 = vector.broadcast %10 : vector<8x1xf32> to vector<8x128xf32>
    %13 = vector.broadcast %11 : vector<1x128xf32> to vector<8x128xf32>
    %14 = arith.mulf %12, %13 : vector<8x128xf32>
    %15 = arith.addf %9, %14 : vector<8x128xf32>
    %16 = vector.extract_strided_slice %0 {offsets = [0, 2], sizes = [8, 1], strides = [1, 1]} : vector<8x4xf32> to vector<8x1xf32>
    %17 = vector.extract_strided_slice %1 {offsets = [2, 0], sizes = [1, 128], strides = [1, 1]} : vector<4x128xf32> to vector<1x128xf32>
    %18 = vector.broadcast %16 : vector<8x1xf32> to vector<8x128xf32>
    %19 = vector.broadcast %17 : vector<1x128xf32> to vector<8x128xf32>
    %20 = arith.mulf %18, %19 : vector<8x128xf32>
    %21 = arith.addf %15, %20 : vector<8x128xf32>
    %22 = vector.extract_strided_slice %0 {offsets = [0, 3], sizes = [8, 1], strides = [1, 1]} : vector<8x4xf32> to vector<8x1xf32>
    %23 = vector.extract_strided_slice %1 {offsets = [3, 0], sizes = [1, 128], strides = [1, 1]} : vector<4x128xf32> to vector<1x128xf32>
    %24 = vector.broadcast %22 : vector<8x1xf32> to vector<8x128xf32>
    %25 = vector.broadcast %23 : vector<1x128xf32> to vector<8x128xf32>
    %26 = arith.mulf %24, %25 : vector<8x128xf32>
    %27 = arith.addf %21, %26 : vector<8x128xf32>
    %cst = arith.constant 0.000000e+00 : f32
    %28 = vector.broadcast %cst : f32 to vector<8x128xf32>
    %29 = arith.maximumf %27, %28 : vector<8x128xf32>
    %30 = arith.truncf %29 : vector<8x128xf32> to vector<8x128xbf16>
    %c0_5 = arith.constant 0 : index
    %c0_6 = arith.constant 0 : index
    %31 = vector.load %arg5[%c0_5, %c0_6] : memref<128x128xbf16, #tpu.memory_space<vmem>>, vector<128x128xbf16>
    %cst_7 = arith.constant dense<0.000000e+00> : vector<8x128xf32>
    %32 = tpu.matmul %30, %31, %cst_7 {dimension_numbers = #tpu.dot_dimension_numbers<[1], [0], [0], [1], [0, 0, 1, 1], [], []>} : vector<8x128xbf16>, vector<128x128xbf16>, vector<8x128xf32> -> vector<8x128xf32>
    %c0_8 = arith.constant 0 : index
    %c0_9 = arith.constant 0 : index
    %33 = vector.load %arg6[%c0_8, %c0_9] : memref<1x128xf32, #tpu.memory_space<vmem>>, vector<1x128xf32>
    %34 = vector.broadcast %33 : vector<1x128xf32> to vector<8x128xf32>
    %35 = arith.addf %32, %34 : vector<8x128xf32>
    %cst_10 = arith.constant 0.000000e+00 : f32
    %36 = vector.broadcast %cst_10 : f32 to vector<8x128xf32>
    %37 = arith.maximumf %35, %36 : vector<8x128xf32>
    %38 = tpu.iota {dimensions = array<i32: 0>} : vector<8x128xi32>
    %39 = tpu.iota {dimensions = array<i32: 1>} : vector<8x128xi32>
    %c0_11 = arith.constant 0 : index
    %40 = memref.load %arg1[%c0_11] : memref<1xi32, #tpu.memory_space<smem>>
    %c1024_i32 = arith.constant 1024 : i32
    %41 = arith.muli %arg0, %c1024_i32 : i32
    %c128_i32 = arith.constant 128 : i32
    %42 = vector.broadcast %c128_i32 : i32 to vector<8x128xi32>
    %43 = arith.muli %38, %42 : vector<8x128xi32>
    %44 = vector.broadcast %41 : i32 to vector<8x128xi32>
    %45 = arith.addi %44, %43 : vector<8x128xi32>
    %46 = arith.addi %45, %39 : vector<8x128xi32>
    %c-1640531527_i32 = arith.constant -1640531527 : i32
    %47 = arith.muli %40, %c-1640531527_i32 : i32
    %48 = vector.broadcast %47 : i32 to vector<8x128xi32>
    %49 = arith.xori %46, %48 : vector<8x128xi32>
    %c16_i32 = arith.constant 16 : i32
    %50 = vector.broadcast %c16_i32 : i32 to vector<8x128xi32>
    %51 = arith.shrui %49, %50 : vector<8x128xi32>
    %52 = arith.xori %49, %51 : vector<8x128xi32>
    %c2146121005_i32 = arith.constant 2146121005 : i32
    %53 = vector.broadcast %c2146121005_i32 : i32 to vector<8x128xi32>
    %54 = arith.muli %52, %53 : vector<8x128xi32>
    %c15_i32 = arith.constant 15 : i32
    %55 = vector.broadcast %c15_i32 : i32 to vector<8x128xi32>
    %56 = arith.shrui %54, %55 : vector<8x128xi32>
    %57 = arith.xori %54, %56 : vector<8x128xi32>
    %c-2073254261_i32 = arith.constant -2073254261 : i32
    %58 = vector.broadcast %c-2073254261_i32 : i32 to vector<8x128xi32>
    %59 = arith.muli %57, %58 : vector<8x128xi32>
    %c16_i32_12 = arith.constant 16 : i32
    %60 = vector.broadcast %c16_i32_12 : i32 to vector<8x128xi32>
    %61 = arith.shrui %59, %60 : vector<8x128xi32>
    %62 = arith.xori %59, %61 : vector<8x128xi32>
    %c1717986918_i32 = arith.constant 1717986918 : i32
    %63 = vector.broadcast %c1717986918_i32 : i32 to vector<8x128xi32>
    %64 = arith.cmpi uge, %62, %63 : vector<8x128xi32>
    %cst_13 = arith.constant 0.000000e+00 : f32
    %65 = vector.broadcast %cst_13 : f32 to vector<8x128xf32>
    %66 = arith.select %64, %37, %65 : vector<8x128xi1>, vector<8x128xf32>
    %c0_14 = arith.constant 0 : index
    %c0_15 = arith.constant 0 : index
    %67 = vector.load %arg7[%c0_14, %c0_15] : memref<8x128xbf16, #tpu.memory_space<vmem>>, vector<8x128xbf16>
    %68 = arith.truncf %66 : vector<8x128xf32> to vector<8x128xbf16>
    %cst_16 = arith.constant dense<0.000000e+00> : vector<8x8xf32>
    %69 = tpu.matmul %67, %68, %cst_16 {dimension_numbers = #tpu.dot_dimension_numbers<[1], [1], [0], [0], [0, 0, 1, 0], [], []>} : vector<8x128xbf16>, vector<8x128xbf16>, vector<8x8xf32> -> vector<8x8xf32>
    %c0_17 = arith.constant 0 : index
    %c0_18 = arith.constant 0 : index
    %70 = vector.load %arg8[%c0_17, %c0_18] : memref<8x1xf32, #tpu.memory_space<vmem>>, vector<8x1xf32>
    %71 = vector.broadcast %70 : vector<8x1xf32> to vector<8x8xf32>
    %72 = arith.addf %69, %71 : vector<8x8xf32>
    %c0_19 = arith.constant 0 : index
    %c0_20 = arith.constant 0 : index
    %73 = vector.load %arg9[%c0_19, %c0_20] : memref<8x8xf32, #tpu.memory_space<vmem>>, vector<8x8xf32>
    tpu.vector_store %arg9[%c0_19, %c0_20], %72 {strides = array<i32>} : memref<8x8xf32, #tpu.memory_space<vmem>>, vector<8x8xf32>,
    return
  }
  func.func @transform_0(%arg0: i32, %arg1: memref<1xi32, #tpu.memory_space<smem>>) -> (i32, i32) {
    %c0_i32 = arith.constant 0 : i32
    %c0_i32_0 = arith.constant 0 : i32
    return %arg0, %c0_i32 : i32, i32
  }
  func.func @transform_1(%arg0: i32, %arg1: memref<1xi32, #tpu.memory_space<smem>>) -> (i32, i32) {
    %c0_i32 = arith.constant 0 : i32
    %c0_i32_0 = arith.constant 0 : i32
    %c0_i32_1 = arith.constant 0 : i32
    return %c0_i32, %c0_i32_0 : i32, i32
  }
  func.func @transform_2(%arg0: i32, %arg1: memref<1xi32, #tpu.memory_space<smem>>) -> (i32, i32) {
    %c0_i32 = arith.constant 0 : i32
    %c0_i32_0 = arith.constant 0 : i32
    %c0_i32_1 = arith.constant 0 : i32
    return %c0_i32, %c0_i32_0 : i32, i32
  }
  func.func @transform_3(%arg0: i32, %arg1: memref<1xi32, #tpu.memory_space<smem>>) -> (i32, i32) {
    %c0_i32 = arith.constant 0 : i32
    %c0_i32_0 = arith.constant 0 : i32
    %c0_i32_1 = arith.constant 0 : i32
    return %c0_i32, %c0_i32_0 : i32, i32
  }
  func.func @transform_4(%arg0: i32, %arg1: memref<1xi32, #tpu.memory_space<smem>>) -> (i32, i32) {
    %c0_i32 = arith.constant 0 : i32
    %c0_i32_0 = arith.constant 0 : i32
    %c0_i32_1 = arith.constant 0 : i32
    return %c0_i32, %c0_i32_0 : i32, i32
  }
  func.func @transform_5(%arg0: i32, %arg1: memref<1xi32, #tpu.memory_space<smem>>) -> (i32, i32) {
    %c0_i32 = arith.constant 0 : i32
    %c0_i32_0 = arith.constant 0 : i32
    %c0_i32_1 = arith.constant 0 : i32
    return %c0_i32, %c0_i32_0 : i32, i32
  }
  func.func @transform_6(%arg0: i32, %arg1: memref<1xi32, #tpu.memory_space<smem>>) -> (i32, i32) {
    %c0_i32 = arith.constant 0 : i32
    %c0_i32_0 = arith.constant 0 : i32
    %c0_i32_1 = arith.constant 0 : i32
    return %c0_i32, %c0_i32_0 : i32, i32
  }
  func.func @transform_7(%arg0: i32, %arg1: memref<1xi32, #tpu.memory_space<smem>>) -> (i32, i32) {
    %c0_i32 = arith.constant 0 : i32
    %c0_i32_0 = arith.constant 0 : i32
    return %c0_i32, %arg0 : i32, i32
  }
}

</mosaic_0001>

<llo_original>
// kernel: tpu_custom_call.1
$region0: #{tpu_custom_call.1}
  #allocation0 [shape = 'u32[]', space=smem, size = 0x4, offset = 0x4, fixed_abs, tag = 'smem constant byte address 0x4 - core index']
  #allocation1 [shape = 'u32[144,128]{1,0:T(1,128)}', space=vmem, size = 0x12000, scoped, tag = 'internal scratch']
  #allocation2 [shape = 's32[1]{0}', space=sflag, size = 0x4, scoped, tag = 'scoped memory for tpu_custom_call.1']
  #allocation3 [shape = 's32[1]{0:T(128)S(6)}', space=smem, size = 0x200, scoped, tag = 'prefetched SMEM operand 0']
  %s0 = inlined_call_operand.<no memory space> [shape: s32[1], index: 0, kind: input, shape index: {}]
  %s1 = inlined_call_operand.vmem [shape: f32[8,4], index: 1, kind: input, shape index: {}]
  %s2 = inlined_call_operand.vmem [shape: f32[4,128], index: 2, kind: input, shape index: {}]
  %s3 = inlined_call_operand.vmem [shape: f32[1,128], index: 3, kind: input, shape index: {}]
  %s4 = inlined_call_operand.hbm [shape: bf16[128,128], index: 4, kind: input, shape index: {}]
  %s5 = inlined_call_operand.vmem [shape: f32[1,128], index: 5, kind: input, shape index: {}]
  %s6 = inlined_call_operand.vmem [shape: bf16[8,128], index: 6, kind: input, shape index: {}]
  %s7 = inlined_call_operand.vmem [shape: f32[8,1], index: 7, kind: input, shape index: {}]
  %s8 = inlined_call_operand.hbm [shape: f32[8,8], index: 8, kind: output, shape index: {}]
  %s9 = sld [smem:[#allocation0]]
  $region42: #{tpu_custom_call.1} parent=0
    _
  %s11 = ssub.s32 1, %s9
  %s12 = scalar_select 0, %s11, %s9
  %13 = sst [smem:[#allocation3]] %s0
  $region1: #{tpu_custom_call.1} parent=0
    #allocation4 [shape = 'u8[32768]{0}', space=vmem, size = 0x8000, scoped, tag = 'input window, operand 4, single buffered']
    #allocation5 [shape = 's32[1]{0}', space=sflag, size = 0x4, scoped, tag = 'scoped memory for tpu_custom_call.1']
    #allocation6 [shape = 's32[1]{0}', space=sflag, size = 0x4, scoped, tag = 'scoped memory for tpu_custom_call.1']
    #allocation7 [shape = 'u8[4096]{0}', space=vmem, size = 0x1000, scoped, tag = 'output window, operand 0, single buffered']
    %14 = vsyncpa [#allocation5], 0
    %15 = vsyncpa [#allocation6], 0
    // Predicated region
    $region2: #{tpu_custom_call.1} parent=1 // pred_check
      _
    $region3: #{tpu_custom_call.1} parent=1 // pred_check_branch
      %17 = sbr.rel (0) target = $region5
    $region4: #{tpu_custom_call.1} parent=1 // pred_region
      _
    $region5: #{tpu_custom_call.1} parent=1 // pred_fallthru
      _
    // Predicated region
    $region6: #{tpu_custom_call.1} parent=1 // pred_check
      _
    $region7: #{tpu_custom_call.1} parent=1 // pred_check_branch
      %19 = sbr.rel (0) target = $region9
    $region8: #{tpu_custom_call.1} parent=1 // pred_region
      _
    $region9: #{tpu_custom_call.1} parent=1 // pred_fallthru
      _
    // Predicated region
    $region10: #{tpu_custom_call.1} parent=1 // pred_check
      _
    $region11: #{tpu_custom_call.1} parent=1 // pred_check_branch
      %21 = sbr.rel (0) target = $region13
    $region12: #{tpu_custom_call.1} parent=1 // pred_region
      _
    $region13: #{tpu_custom_call.1} parent=1 // pred_fallthru
      _
    // Predicated region
    $region14: #{tpu_custom_call.1} parent=1 // pred_check
      _
    $region15: #{tpu_custom_call.1} parent=1 // pred_check_branch
      %23 = sbr.rel (0) target = $region17
    $region16: #{tpu_custom_call.1} parent=1 // pred_region
      %s25 = ssub.s32 1024, 1024
      %26 = vsyncadd [#allocation5], %s25
      %s27 = sshll.u32 [#allocation4], 4
      %s28 = int_to_ptr.vmem [resolvable:$true] %s27
      %33 = dma.hbm_to_vmem [thread:$0]  %s4, 1024, %s28, [#allocation5], 64, 64, 4
    $region17: #{tpu_custom_call.1} parent=1 // pred_fallthru
      _
    // Predicated region
    $region18: #{tpu_custom_call.1} parent=1 // pred_check
      _
    $region19: #{tpu_custom_call.1} parent=1 // pred_check_branch
      %35 = sbr.rel (0) target = $region21
    $region20: #{tpu_custom_call.1} parent=1 // pred_region
      _
    $region21: #{tpu_custom_call.1} parent=1 // pred_fallthru
      _
    // Predicated region
    $region22: #{tpu_custom_call.1} parent=1 // pred_check
      _
    $region23: #{tpu_custom_call.1} parent=1 // pred_check_branch
      %37 = sbr.rel (0) target = $region25
    $region24: #{tpu_custom_call.1} parent=1 // pred_region
      _
    $region25: #{tpu_custom_call.1} parent=1 // pred_fallthru
      _
    // Predicated region
    $region26: #{tpu_custom_call.1} parent=1 // pred_check
      _
    $region27: #{tpu_custom_call.1} parent=1 // pred_check_branch
      %39 = sbr.rel (0) target = $region29
    $region28: #{tpu_custom_call.1} parent=1 // pred_region
      _
    $region29: #{tpu_custom_call.1} parent=1 // pred_fallthru
      _
    // Predicated region
    $region30: #{tpu_custom_call.1} parent=1 // pred_check
      _
    $region31: #{tpu_custom_call.1} parent=1 // pred_check_branch
      %41 = sbr.rel (0) target = $region33
    $region32: #{tpu_custom_call.1} parent=1 // pred_region
      %42 = dma.done [#allocation5], 1024
    $region33: #{tpu_custom_call.1} parent=1 // pred_fallthru
      _
    %v44 = vld [vmem:[%s1] sm:$0xff]
    %v45 = vld [vmem:[%s2] sm:$0xf]
    %v46 = vld [vmem:[%s3] sm:$0x1]
    %48 = vset.pattern.permute.xlu0 0
    %49 = vperm.xlu0 %48, %v44
    %v50 = vpop.permute.xlu0 %49
    %v52 = vlaneseq
    %v53 = vshrl.u32 %v52, 7
    %v54 = vsub.s32 0, %v53
    %v55 = vrot.slane %v45, %v54
    %v56 = vmul.f32 %v50, %v55
    %v58 = vlaneseq
    %v59 = vshrl.u32 %v58, 7
    %v60 = vsub.s32 0, %v59
    %v61 = vrot.slane %v46, %v60
    %v63 = vadd.f32 %v61, %v56
    %64 = vset.pattern.permute.xlu0 1
    %65 = vperm.xlu0 %64, %v44
    %v66 = vpop.permute.xlu0 %65
    %v68 = vlaneseq
    %v69 = vshrl.u32 %v68, 7
    %v70 = vsub.s32 1, %v69
    %v71 = vrot.slane %v45, %v70
    %v72 = vmul.f32 %v66, %v71
    %v73 = vadd.f32 %v63, %v72
    %74 = vset.pattern.permute.xlu0 2
    %75 = vperm.xlu0 %74, %v44
    %v76 = vpop.permute.xlu0 %75
    %v78 = vlaneseq
    %v79 = vshrl.u32 %v78, 7
    %v80 = vsub.s32 2, %v79
    %v81 = vrot.slane %v45, %v80
    %v82 = vmul.f32 %v76, %v81
    %v83 = vadd.f32 %v73, %v82
    %84 = vset.pattern.permute.xlu0 3
    %85 = vperm.xlu0 %84, %v44
    %v86 = vpop.permute.xlu0 %85
    %v88 = vlaneseq
    %v89 = vshrl.u32 %v88, 7
    %v90 = vsub.s32 3, %v89
    %v91 = vrot.slane %v45, %v90
    %v92 = vmul.f32 %v86, %v91
    %v93 = vadd.f32 %v83, %v92
    %v94 = vmax.f32 %v93, 0.0
    %v95 = vpack.c.bf16 %v94, %v94
    %v96 = vld [vmem:[#allocation4] sm:$0xf]
    %v97 = vld [vmem:[#allocation4 + $0x4] sm:$0xf]
    %v98 = vld [vmem:[#allocation4 + $0x8] sm:$0xf]
    %v99 = vld [vmem:[#allocation4 + $0xc] sm:$0xf]
    %v100 = vld [vmem:[#allocation4 + $0x10] sm:$0xf]
    %v101 = vld [vmem:[#allocation4 + $0x14] sm:$0xf]
    %v102 = vld [vmem:[#allocation4 + $0x18] sm:$0xf]
    %v103 = vld [vmem:[#allocation4 + $0x1c] sm:$0xf]
    %v104 = vld [vmem:[#allocation4 + $0x20] sm:$0xf]
    %v105 = vld [vmem:[#allocation4 + $0x24] sm:$0xf]
    %v106 = vld [vmem:[#allocation4 + $0x28] sm:$0xf]
    %v107 = vld [vmem:[#allocation4 + $0x2c] sm:$0xf]
    %v108 = vld [vmem:[#allocation4 + $0x30] sm:$0xf]
    %v109 = vld [vmem:[#allocation4 + $0x34] sm:$0xf]
    %v110 = vld [vmem:[#allocation4 + $0x38] sm:$0xf]
    %v111 = vld [vmem:[#allocation4 + $0x3c] sm:$0xf]
    %v112 = vld [vmem:[%s5] sm:$0x1]
    %v114 = vlaneseq
    %v115 = vshrl.u32 %v114, 7
    %v116 = vsub.s32 0, %v115
    %v117 = vrot.slane %v112, %v116
    %v135 = vunpack.c.l.b16 %v96
    %v136 = vunpack.c.l.b16 %v97
    %v137 = vunpack.c.l.b16 %v98
    %v138 = vunpack.c.l.b16 %v99
    %v139 = vunpack.c.l.b16 %v100
    %v140 = vunpack.c.l.b16 %v101
    %v141 = vunpack.c.l.b16 %v102
    %v142 = vunpack.c.l.b16 %v103
    %v143 = vunpack.c.l.b16 %v104
    %v144 = vunpack.c.l.b16 %v105
    %v145 = vunpack.c.l.b16 %v106
    %v146 = vunpack.c.l.b16 %v107
    %v147 = vunpack.c.l.b16 %v108
    %v148 = vunpack.c.l.b16 %v109
    %v149 = vunpack.c.l.b16 %v110
    %v150 = vunpack.c.l.b16 %v111
    %v151 = vpack.c.b16 %v136, %v135
    %v152 = vpack.c.b16 %v138, %v137
    %v153 = vpack.c.b16 %v140, %v139
    %v154 = vpack.c.b16 %v142, %v141
    %v155 = vpack.c.b16 %v144, %v143
    %v156 = vpack.c.b16 %v146, %v145
    %v157 = vpack.c.b16 %v148, %v147
    %v158 = vpack.c.b16 %v150, %v149
    %167 = vmatprep.subr.bf16.mxu0 0
    %168 = vmatpush1.bf16.msra.mxu0 %v151
    %169 = vmatprep.subr.bf16.mxu0 0
    %170 = vmatpush1.bf16.msra.mxu0 %v152
    %171 = vmatprep.subr.bf16.mxu0 0
    %172 = vmatpush1.bf16.msra.mxu0 %v153
    %173 = vmatprep.subr.bf16.mxu0 0
    %174 = vmatpush1.bf16.msra.mxu0 %v154
    %175 = vmatprep.subr.bf16.mxu0 0
    %176 = vmatpush1.bf16.msra.mxu0 %v155
    %177 = vmatprep.subr.bf16.mxu0 0
    %178 = vmatpush1.bf16.msra.mxu0 %v156
    %179 = vmatprep.subr.bf16.mxu0 0
    %180 = vmatpush1.bf16.msra.mxu0 %v157
    %181 = vmatprep.subr.bf16.mxu0 0
    %182 = vmatpush1.bf16.msra.mxu0 %v158
    %183 = vmatprep.subr.bf16.mxu0 0
    %184 = vmatpush1.bf16.msra.mxu0 0
    %185 = vmatprep.subr.bf16.mxu0 0
    %186 = vmatpush1.bf16.msra.mxu0 0
    %187 = vmatprep.subr.bf16.mxu0 0
    %188 = vmatpush1.bf16.msra.mxu0 0
    %189 = vmatprep.subr.bf16.mxu0 0
    %190 = vmatpush1.bf16.msra.mxu0 0
    %191 = vmatprep.subr.bf16.mxu0 0
    %192 = vmatpush1.bf16.msra.mxu0 0
    %193 = vmatprep.subr.bf16.mxu0 0
    %194 = vmatpush1.bf16.msra.mxu0 0
    %195 = vmatprep.subr.bf16.mxu0 0
    %196 = vmatpush1.bf16.msra.mxu0 0
    %197 = vmatprep.subr.bf16.mxu0 0
    %198 = vmatpush1.bf16.msra.mxu0 0
    %199 = vmatprep.mubr.bf16.mxu0 0
    %200 = vmatmul.mubr.bf16.gmra.mrb[0].mxu0 %v95
    %v201 = vpop.f32.mrb[0].mxu0
    %v202 = vadd.f32 %v117, %v201
    %v203 = vpop.f32.mrb[0].mxu0
    %v204 = vpop.f32.mrb[0].mxu0
    %v205 = vpop.f32.mrb[0].mxu0
    %206 = vdwg.mxu0
    %v207 = vmax.f32 %v202, 0.0
    %v208 = vlaneseq
    %v209 = vshrl.u32 %v208, 7
    %v210 = vlaneseq
    %v211 = vand.u32 %v210, 127
    %s212 = sld [smem:[#allocation3]]
    %s213 = smul.u32 0, 1024
    %v214 = vmul.u32 %v209, 128
    %v215 = vstv %s213
    %v216 = vadd.s32 %v215, %v214
    %v217 = vadd.s32 %v216, %v211
    %s218 = smul.u32 %s212, 2654435769
    %v219 = vstv %s218
    %v220 = vxor.u32 %v217, %v219
    %v221 = vshrl.u32 %v220, 16
    %v222 = vxor.u32 %v220, %v221
    %v223 = vmul.u32 %v222, 2146121005
    %v224 = vshrl.u32 %v223, 15
    %v225 = vxor.u32 %v223, %v224
    %v226 = vmul.u32 %v225, 2221713035
    %v227 = vshrl.u32 %v226, 16
    %v228 = vxor.u32 %v226, %v227
    %vm229 = vcmp.ge.u32.totalorder %v228, 1717986918
    %v230 = vsel %vm229, %v207, 0.0
    %v231 = vld [vmem:[%s6] sm:$0xf]
    %v232 = vpack.c.bf16 %v230, %v230
    %v233 = vld [vmem:[%s7] sm:$0xff]
    %235 = vset.pattern.permute.xlu0 0
    %236 = vperm.xlu0 %235, %v233
    %v237 = vpop.permute.xlu0 %236
    %239 = vmatprep.subr.bf16.mxu0 0
    %240 = vmatpush1.bf16.xpose.msra.mxu0 %v232
    %241 = vmatprep.subr.bf16.mxu0 0
    %242 = vmatpush1.bf16.xpose.msra.mxu0 0
    %243 = vmatprep.subr.bf16.mxu0 0
    %244 = vmatpush1.bf16.xpose.msra.mxu0 0
    %245 = vmatprep.subr.bf16.mxu0 0
    %246 = vmatpush1.bf16.xpose.msra.mxu0 0
    %247 = vmatprep.subr.bf16.mxu0 0
    %248 = vmatpush1.bf16.xpose.msra.mxu0 0
    %249 = vmatprep.subr.bf16.mxu0 0
    %250 = vmatpush1.bf16.xpose.msra.mxu0 0
    %251 = vmatprep.subr.bf16.mxu0 0
    %252 = vmatpush1.bf16.xpose.msra.mxu0 0
    %253 = vmatprep.subr.bf16.mxu0 0
    %254 = vmatpush1.bf16.xpose.msra.mxu0 0
    %255 = vmatprep.subr.bf16.mxu0 0
    %256 = vmatpush1.bf16.xpose.msra.mxu0 0
    %257 = vmatprep.subr.bf16.mxu0 0
    %258 = vmatpush1.bf16.xpose.msra.mxu0 0
    %259 = vmatprep.subr.bf16.mxu0 0
    %260 = vmatpush1.bf16.xpose.msra.mxu0 0
    %261 = vmatprep.subr.bf16.mxu0 0
    %262 = vmatpush1.bf16.xpose.msra.mxu0 0
    %263 = vmatprep.subr.bf16.mxu0 0
    %264 = vmatpush1.bf16.xpose.msra.mxu0 0
    %265 = vmatprep.subr.bf16.mxu0 0
    %266 = vmatpush1.bf16.xpose.msra.mxu0 0
    %267 = vmatprep.subr.bf16.mxu0 0
    %268 = vmatpush1.bf16.xpose.msra.mxu0 0
    %269 = vmatprep.subr.bf16.mxu0 0
    %270 = vmatpush1.bf16.xpose.msra.mxu0 0
    %271 = vmatprep.mubr.bf16.mxu0 0
    %272 = vmatmul.mubr.bf16.gmra.mrb[0].mxu0 %v231
    %v273 = vpop.f32.mrb[0].mxu0
    %v274 = vadd.f32 %v237, %v273
    %v275 = vpop.f32.mrb[0].mxu0
    %v276 = vpop.f32.mrb[0].mxu0
    %v277 = vpop.f32.mrb[0].mxu0
    %278 = vdwg.mxu0
    %vm279 = vcmask 64512
    %280 = vst.msk [vmem:[#allocation7] sm:$0xff] %vm279, %v274
    // Predicated region
    $region34: #{tpu_custom_call.1} parent=1 // pred_check
      _
    $region35: #{tpu_custom_call.1} parent=1 // pred_check_branch
      %282 = sbr.rel (0) target = $region37
    $region36: #{tpu_custom_call.1} parent=1 // pred_region
      %s284 = ssub.s32 128, 128
      %285 = vsyncadd [#allocation6], %s284
      %s287 = sshll.u32 [#allocation7], 4
      %s288 = int_to_ptr.vmem [resolvable:$true] %s287
      %290 = dma.vmem_to_hbm [thread:$0]  %s288, 128, %s8, [#allocation6]
    $region37: #{tpu_custom_call.1} parent=1 // pred_fallthru
      _
    // Predicated region
    $region38: #{tpu_custom_call.1} parent=1 // pred_check
      _
    $region39: #{tpu_custom_call.1} parent=1 // pred_check_branch
      %292 = sbr.rel (0) target = $region41
    $region40: #{tpu_custom_call.1} parent=1 // pred_region
      %293 = dma.done [#allocation6], 128
    $region41: #{tpu_custom_call.1} parent=1 // pred_fallthru
      _
    %294 = vsyncpa [#allocation5], 1
    %295 = vsyncpa [#allocation6], 1

</llo_original>
